<compile_context>
chip_gen: v5e
topology: v5e:2x2
jax: 0.10.0
libtpu: 0.0.40
codegen_flags: <defaults>
</compile_context>

<pallas_src>
import functools

import jax
import jax.numpy as jnp
from jax import lax
from jax.experimental import pallas as pl
from jax.experimental.pallas import tpu as pltpu


def _nt_xent_kernel(rows_ref, cols_ref, partner_ref, nll_ref, denom_acc,
                    *, inv_temp):
    """One (row-tile, col-tile) step of the NT-Xent denominator reduction."""
    j = pl.program_id(1)

    @pl.when(j == 0)
    def _init():
        denom_acc[...] = jnp.zeros_like(denom_acc)

    rows = rows_ref[...]                                     # (TR, D), native dtype
    # Fold 1/temperature into the small (TR, D) operand instead of the
    # (TR, TC) sim tile.
    scale = jnp.asarray(inv_temp, dtype=rows.dtype)
    sim = lax.dot_general(                                   # (TR, TC), f32 acc
        rows * scale, cols_ref[...],
        dimension_numbers=(((1,), (1,)), ((), ())),
        preferred_element_type=jnp.float32,
    )
    denom_acc[...] += jnp.sum(jnp.exp(sim), axis=-1, keepdims=True)

    @pl.when(j == pl.num_programs(1) - 1)
    def _finalize():
        inv_t = jnp.float32(inv_temp)
        rows_f32 = rows.astype(jnp.float32)
        partner_f32 = partner_ref[...].astype(jnp.float32)
        # Diagonal of the full similarity matrix for these rows is just
        # ||out_r||^2 / T: subtract its exp from the row sum instead of
        # masking an (n, n) matrix.
        self_sim = jnp.exp(
            jnp.sum(rows_f32 * rows_f32, axis=-1, keepdims=True) * inv_t)
        denom = denom_acc[...] - self_sim
        # Positive-pair term directly in log space (no exp/log round trip).
        pos_logit = jnp.sum(rows_f32 * partner_f32, axis=-1, keepdims=True) * inv_t
        nll_ref[...] = jnp.log(denom) - pos_logit


def _pick_tile(n, cap):
    """Largest multiple-of-8 divisor of n that is <= cap (n itself if small)."""
    if n <= cap:
        return n
    t = (cap // 8) * 8
    while t >= 8:
        if n % t == 0:
            return t
        t -= 8
    return n  # fallback: monolithic along this axis


def nt_xent(z_i, z_j, *, batch_size, temperature,
            row_tile_cap=256, col_tile_cap=512):
    """Pallas implementation of NT_Xent.forward(z_i, z_j) -> scalar loss."""
    assert z_i.shape == z_j.shape and z_i.shape[0] == batch_size
    n = 2 * batch_size
    d = z_i.shape[1]

    # One-time layout ops in plain XLA (not inside the kernel):
    #   out[r]      = r-th row of the stacked views
    #   partner[r]  = the positive-pair row for out[r]
    out = jnp.concatenate([z_i, z_j], axis=0)        # (2B, D)
    partner = jnp.concatenate([z_j, z_i], axis=0)    # (2B, D)

    tr = _pick_tile(n, row_tile_cap)
    tc = _pick_tile(n, col_tile_cap)
    grid = (n // tr, n // tc)

    kernel = functools.partial(_nt_xent_kernel, inv_temp=1.0 / temperature)

    nll = pl.pallas_call(
        kernel,
        out_shape=jax.ShapeDtypeStruct((n, 1), jnp.float32),
        grid_spec=pltpu.PrefetchScalarGridSpec(
            num_scalar_prefetch=0,
            grid=grid,
            in_specs=[
                pl.BlockSpec((tr, d), lambda i, j: (i, 0)),   # row tile of out
                pl.BlockSpec((tc, d), lambda i, j: (j, 0)),   # col tile of out
                pl.BlockSpec((tr, d), lambda i, j: (i, 0)),   # positive partners
            ],
            out_specs=pl.BlockSpec((tr, 1), lambda i, j: (i, 0)),
            scratch_shapes=[pltpu.VMEM((tr, 1), jnp.float32)],
        ),
        compiler_params=pltpu.CompilerParams(
            dimension_semantics=("parallel", "arbitrary")),
    )(out, out, partner)

    # Trivial final reduction over 2B per-row losses.
    return jnp.mean(nll)


def _nt_xent_ref(z_i, z_j, *, batch_size, temperature):
    """Pure-JAX reference mirroring the PyTorch module exactly."""
    out = jnp.concatenate([z_i, z_j], axis=0)
    sim = jnp.exp(out @ out.T / temperature)
    n = 2 * batch_size
    mask = ~jnp.eye(n, dtype=bool)
    denom = jnp.sum(jnp.where(mask, sim, 0.0), axis=-1)
    pos = jnp.exp(jnp.sum(z_i * z_j, axis=-1) / temperature)
    pos = jnp.concatenate([pos, pos], axis=0)
    return jnp.mean(-jnp.log(pos / denom))


if __name__ == "__main__":
    batch_size = 8
    hidden = 32
    temperature = 0.5

    key = jax.random.PRNGKey(0)
    k1, k2 = jax.random.split(key)
    z_i = jax.random.normal(k1, (batch_size, hidden), dtype=jnp.float32)
    z_j = jax.random.normal(k2, (batch_size, hidden), dtype=jnp.float32)
    # SimCLR projections are L2-normalized before NT-Xent (cosine similarity);
    # this also keeps exp(sim / T) well scaled in f32.
    z_i = z_i / jnp.linalg.norm(z_i, axis=-1, keepdims=True)
    z_j = z_j / jnp.linalg.norm(z_j, axis=-1, keepdims=True)

    loss = nt_xent(z_i, z_j, batch_size=batch_size, temperature=temperature)
    loss = jax.block_until_ready(loss)

    ref = _nt_xent_ref(z_i, z_j, batch_size=batch_size, temperature=temperature)
    assert jnp.allclose(loss, ref, rtol=1e-5, atol=1e-5), (loss, ref)

    print("KERNEL_OK")
</pallas_src>

<mosaic_0001>
module attributes {stable_mosaic.version = 11 : i64} {
  func.func @_nt_xent_kernel(%arg0: i32, %arg1: i32, %arg2: memref<16x32xf32, #tpu.memory_space<vmem>>, %arg3: memref<16x32xf32, #tpu.memory_space<vmem>>, %arg4: memref<16x32xf32, #tpu.memory_space<vmem>>, %arg5: memref<16x1xf32, #tpu.memory_space<vmem>>, %arg6: memref<16x1xf32, #tpu.memory_space<vmem>>) attributes {dimension_semantics = [#tpu.dimension_semantics<parallel>, #tpu.dimension_semantics<arbitrary>], iteration_bounds = array<i64: 1, 1>, scalar_prefetch = 0 : i64, scratch_operands = 1 : i64, tpu.core_type = #tpu.core_type<tc>, window_params = [{transform_indices = @transform_0, window_bounds = array<i64: 16, 32>}, {transform_indices = @transform_1, window_bounds = array<i64: 16, 32>}, {transform_indices = @transform_2, window_bounds = array<i64: 16, 32>}, {transform_indices = @transform_3, window_bounds = array<i64: 16, 1>}]} {
    %c0_i32 = arith.constant 0 : i32
    %0 = arith.cmpi eq, %arg1, %c0_i32 : i32
    %1 = arith.extui %0 : i1 to i32
    %c0_i32_0 = arith.constant 0 : i32
    %2 = arith.cmpi ne, %1, %c0_i32_0 : i32
    scf.if %2 {
      %cst_12 = arith.constant 0.000000e+00 : f32
      %17 = vector.broadcast %cst_12 : f32 to vector<16x1xf32>
      %c0_13 = arith.constant 0 : index
      %c0_14 = arith.constant 0 : index
      %18 = vector.load %arg6[%c0_13, %c0_14] : memref<16x1xf32, #tpu.memory_space<vmem>>, vector<16x1xf32>
      tpu.vector_store %arg6[%c0_13, %c0_14], %17 {strides = array<i32>} : memref<16x1xf32, #tpu.memory_space<vmem>>, vector<16x1xf32>,
    } else {
    }
    %c0 = arith.constant 0 : index
    %c0_1 = arith.constant 0 : index
    %3 = vector.load %arg2[%c0, %c0_1] : memref<16x32xf32, #tpu.memory_space<vmem>>, vector<16x32xf32>
    %cst = arith.constant 2.000000e+00 : f32
    %4 = vector.broadcast %cst : f32 to vector<16x32xf32>
    %5 = arith.mulf %3, %4 : vector<16x32xf32>
    %c0_2 = arith.constant 0 : index
    %c0_3 = arith.constant 0 : index
    %6 = vector.load %arg3[%c0_2, %c0_3] : memref<16x32xf32, #tpu.memory_space<vmem>>, vector<16x32xf32>
    %cst_4 = arith.constant dense<0.000000e+00> : vector<16x16xf32>
    %7 = tpu.matmul %5, %6, %cst_4 {dimension_numbers = #tpu.dot_dimension_numbers<[1], [1], [0], [0], [0, 0, 1, 0], [], []>} : vector<16x32xf32>, vector<16x32xf32>, vector<16x16xf32> -> vector<16x16xf32>
    %c0_5 = arith.constant 0 : index
    %c0_6 = arith.constant 0 : index
    %8 = vector.load %arg6[%c0_5, %c0_6] : memref<16x1xf32, #tpu.memory_space<vmem>>, vector<16x1xf32>
    %9 = math.exp %7 : vector<16x16xf32>
    %cst_7 = arith.constant dense<0.000000e+00> : vector<16xf32>
    %10 = vector.multi_reduction <add>, %9, %cst_7 [1] : vector<16x16xf32> to vector<16xf32>
    %11 = vector.shape_cast %10 : vector<16xf32> to vector<16x1xf32>
    %12 = arith.addf %8, %11 : vector<16x1xf32>
    %c0_8 = arith.constant 0 : index
    %c0_9 = arith.constant 0 : index
    %13 = vector.load %arg6[%c0_8, %c0_9] : memref<16x1xf32, #tpu.memory_space<vmem>>, vector<16x1xf32>
    tpu.vector_store %arg6[%c0_8, %c0_9], %12 {strides = array<i32>} : memref<16x1xf32, #tpu.memory_space<vmem>>, vector<16x1xf32>,
    %c0_i32_10 = arith.constant 0 : i32
    %14 = arith.cmpi eq, %arg1, %c0_i32_10 : i32
    %15 = arith.extui %14 : i1 to i32
    %c0_i32_11 = arith.constant 0 : i32
    %16 = arith.cmpi ne, %15, %c0_i32_11 : i32
    scf.if %16 {
      %c0_12 = arith.constant 0 : index
      %c0_13 = arith.constant 0 : index
      %17 = vector.load %arg4[%c0_12, %c0_13] : memref<16x32xf32, #tpu.memory_space<vmem>>, vector<16x32xf32>
      %18 = arith.mulf %3, %3 : vector<16x32xf32>
      %cst_14 = arith.constant dense<0.000000e+00> : vector<16xf32>
      %19 = vector.multi_reduction <add>, %18, %cst_14 [1] : vector<16x32xf32> to vector<16xf32>
      %20 = vector.shape_cast %19 : vector<16xf32> to vector<16x1xf32>
      %cst_15 = arith.constant 2.000000e+00 : f32
      %21 = vector.broadcast %cst_15 : f32 to vector<16x1xf32>
      %22 = arith.mulf %20, %21 : vector<16x1xf32>
      %23 = math.exp %22 : vector<16x1xf32>
      %c0_16 = arith.constant 0 : index
      %c0_17 = arith.constant 0 : index
      %24 = vector.load %arg6[%c0_16, %c0_17] : memref<16x1xf32, #tpu.memory_space<vmem>>, vector<16x1xf32>
      %25 = arith.subf %24, %23 : vector<16x1xf32>
      %26 = arith.mulf %3, %17 : vector<16x32xf32>
      %cst_18 = arith.constant dense<0.000000e+00> : vector<16xf32>
      %27 = vector.multi_reduction <add>, %26, %cst_18 [1] : vector<16x32xf32> to vector<16xf32>
      %28 = vector.shape_cast %27 : vector<16xf32> to vector<16x1xf32>
      %cst_19 = arith.constant 2.000000e+00 : f32
      %29 = vector.broadcast %cst_19 : f32 to vector<16x1xf32>
      %30 = arith.mulf %28, %29 : vector<16x1xf32>
      %31 = math.log %25 : vector<16x1xf32>
      %32 = arith.subf %31, %30 : vector<16x1xf32>
      %c0_20 = arith.constant 0 : index
      %c0_21 = arith.constant 0 : index
      %33 = vector.load %arg5[%c0_20, %c0_21] : memref<16x1xf32, #tpu.memory_space<vmem>>, vector<16x1xf32>
      tpu.vector_store %arg5[%c0_20, %c0_21], %32 {strides = array<i32>} : memref<16x1xf32, #tpu.memory_space<vmem>>, vector<16x1xf32>,
    } else {
    }
    return
  }
  func.func @transform_0(%arg0: i32, %arg1: i32) -> (i32, i32) {
    %c0_i32 = arith.constant 0 : i32
    %c0_i32_0 = arith.constant 0 : i32
    return %arg0, %c0_i32 : i32, i32
  }
  func.func @transform_1(%arg0: i32, %arg1: i32) -> (i32, i32) {
    %c0_i32 = arith.constant 0 : i32
    %c0_i32_0 = arith.constant 0 : i32
    return %arg1, %c0_i32 : i32, i32
  }
  func.func @transform_2(%arg0: i32, %arg1: i32) -> (i32, i32) {
    %c0_i32 = arith.constant 0 : i32
    %c0_i32_0 = arith.constant 0 : i32
    return %arg0, %c0_i32 : i32, i32
  }
  func.func @transform_3(%arg0: i32, %arg1: i32) -> (i32, i32) {
    %c0_i32 = arith.constant 0 : i32
    %c0_i32_0 = arith.constant 0 : i32
    return %arg0, %c0_i32 : i32, i32
  }
}

</mosaic_0001>

<llo_original>
// kernel: tpu_custom_call.1
$region0: #{tpu_custom_call.1}
  #allocation0 [shape = 'u32[]', space=smem, size = 0x4, offset = 0x4, fixed_abs, tag = 'smem constant byte address 0x4 - core index']
  #allocation1 [shape = 'u32[72,128]{1,0:T(1,128)}', space=vmem, size = 0x9000, scoped, tag = 'internal scratch']
  #allocation2 [shape = 'f32[16,1]{1,0:T(8,128)}', space=vmem, size = 0x2000, scoped, tag = 'scratch operand']
  %s0 = inlined_call_operand.hbm [shape: f32[16,32], index: 0, kind: input, shape index: {}]
  %s1 = inlined_call_operand.hbm [shape: f32[16,32], index: 1, kind: input, shape index: {}]
  %s2 = inlined_call_operand.hbm [shape: f32[16,32], index: 2, kind: input, shape index: {}]
  %s3 = inlined_call_operand.vmem [shape: f32[16,1], index: 3, kind: output, shape index: {}]
  %s4 = sld [smem:[#allocation0]]
  $region42: #{tpu_custom_call.1} parent=0
    _
  %s6 = ssub.s32 1, %s4
  %s7 = scalar_select 0, %s6, %s4
  $region1: #{tpu_custom_call.1} parent=0
    #allocation3 [shape = 'u8[8192]{0}', space=vmem, size = 0x2000, scoped, tag = 'input window, operand 0, single buffered']
    #allocation4 [shape = 's32[1]{0}', space=sflag, size = 0x4, scoped, tag = 'scoped memory for tpu_custom_call.1']
    #allocation5 [shape = 'u8[8192]{0}', space=vmem, size = 0x2000, scoped, tag = 'input window, operand 1, single buffered']
    #allocation6 [shape = 's32[1]{0}', space=sflag, size = 0x4, scoped, tag = 'scoped memory for tpu_custom_call.1']
    #allocation7 [shape = 'u8[8192]{0}', space=vmem, size = 0x2000, scoped, tag = 'input window, operand 2, single buffered']
    %8 = vsyncpa [#allocation4], 0
    %9 = vsyncpa [#allocation6], 0
    // Predicated region
    $region2: #{tpu_custom_call.1} parent=1 // pred_check
      _
    $region3: #{tpu_custom_call.1} parent=1 // pred_check_branch
      %11 = sbr.rel (0) target = $region5
    $region4: #{tpu_custom_call.1} parent=1 // pred_region
      %13 = vsyncadd [#allocation4], 0
      %s14 = sshll.u32 %s0, 4
      %s15 = int_to_ptr.hbm [resolvable:$true] %s14
      %s16 = sshll.u32 [#allocation3], 4
      %s17 = int_to_ptr.vmem [resolvable:$true] %s16
      %22 = dma.hbm_to_vmem [thread:$0]  %s15, 256, %s17, [#allocation4], 128, 128, 8
    $region5: #{tpu_custom_call.1} parent=1 // pred_fallthru
      _
    // Predicated region
    $region6: #{tpu_custom_call.1} parent=1 // pred_check
      _
    $region7: #{tpu_custom_call.1} parent=1 // pred_check_branch
      %24 = sbr.rel (0) target = $region9
    $region8: #{tpu_custom_call.1} parent=1 // pred_region
      %26 = vsyncadd [#allocation6], 0
      %s27 = sshll.u32 %s1, 4
      %s28 = int_to_ptr.hbm [resolvable:$true] %s27
      %s29 = sshll.u32 [#allocation5], 4
      %s30 = int_to_ptr.vmem [resolvable:$true] %s29
      %35 = dma.hbm_to_vmem [thread:$0]  %s28, 256, %s30, [#allocation6], 128, 128, 8
    $region9: #{tpu_custom_call.1} parent=1 // pred_fallthru
      _
    // Predicated region
    $region10: #{tpu_custom_call.1} parent=1 // pred_check
      _
    $region11: #{tpu_custom_call.1} parent=1 // pred_check_branch
      %37 = sbr.rel (0) target = $region13
    $region12: #{tpu_custom_call.1} parent=1 // pred_region
      %39 = vsyncadd [#allocation6], 0
      %s40 = sshll.u32 %s2, 4
      %s41 = int_to_ptr.hbm [resolvable:$true] %s40
      %s42 = sshll.u32 [#allocation7], 4
      %s43 = int_to_ptr.vmem [resolvable:$true] %s42
      %48 = dma.hbm_to_vmem [thread:$0]  %s41, 256, %s43, [#allocation6], 128, 128, 8
    $region13: #{tpu_custom_call.1} parent=1 // pred_fallthru
      _
    // Predicated region
    $region14: #{tpu_custom_call.1} parent=1 // pred_check
      _
    $region15: #{tpu_custom_call.1} parent=1 // pred_check_branch
      %50 = sbr.rel (0) target = $region17
    $region16: #{tpu_custom_call.1} parent=1 // pred_region
      %52 = dma.done [#allocation4], 256
    $region17: #{tpu_custom_call.1} parent=1 // pred_fallthru
      _
    // Predicated region
    $region18: #{tpu_custom_call.1} parent=1 // pred_check
      _
    $region19: #{tpu_custom_call.1} parent=1 // pred_check_branch
      %54 = sbr.rel (0) target = $region21
    $region20: #{tpu_custom_call.1} parent=1 // pred_region
      %56 = dma.done [#allocation6], 256
    $region21: #{tpu_custom_call.1} parent=1 // pred_fallthru
      _
    // Predicated region
    $region22: #{tpu_custom_call.1} parent=1 // pred_check
      _
    $region23: #{tpu_custom_call.1} parent=1 // pred_check_branch
      %58 = sbr.rel (0) target = $region25
    $region24: #{tpu_custom_call.1} parent=1 // pred_region
      %60 = dma.done [#allocation6], 256
    $region25: #{tpu_custom_call.1} parent=1 // pred_fallthru
      _
    %p61 = scmp.eq.s32.totalorder 0, 0
    // Predicated region
    $region26: #{tpu_custom_call.1} parent=1 // pred_check
      %p62 = pneg %p61
    $region27: #{tpu_custom_call.1} parent=1 // pred_check_branch
      %64 = sbr.rel (%p62) target = $region29
    $region28: #{tpu_custom_call.1} parent=1 // pred_region
      %vm65 = vcmask 7168
      %66 = vst.msk [vmem:[#allocation2] sm:$0xff] %vm65, 0.0
      %67 = vst.msk [vmem:[#allocation2 + $0x8] sm:$0xff] %vm65, 0.0
    $region29: #{tpu_custom_call.1} parent=1 // pred_fallthru
      _
    %v68 = vld [vmem:[#allocation3] sm:$0xff]
    %v69 = vld [vmem:[#allocation3 + $0x8] sm:$0xff]
    %v70 = vmul.f32 %v68, 2.0
    %v71 = vmul.f32 %v69, 2.0
    %v72 = vld [vmem:[#allocation5] sm:$0xff]
    %v73 = vld [vmem:[#allocation5 + $0x8] sm:$0xff]
    %vm74 = vcmask 261120
    %v76 = vsel %vm74, %v70, 0
    %v79 = vsel %vm74, %v71, 0
    %v82 = vsel %vm74, %v72, 0
    %v85 = vsel %vm74, %v73, 0
    %87 = vmatpush.xpose.msra.mxu0 0.0
    %88 = vmatpush.xpose.msra.mxu0 0.0
    %89 = vmatpush.xpose.msra.mxu0 0.0
    %90 = vmatpush.xpose.msra.mxu0 0.0
    %91 = vmatpush.xpose.msra.mxu0 0.0
    %92 = vmatpush.xpose.msra.mxu0 0.0
    %93 = vmatpush.xpose.msra.mxu0 0.0
    %94 = vmatpush.xpose.msra.mxu0 0.0
    %95 = vmatpush.xpose.msra.mxu0 0.0
    %96 = vmatpush.xpose.msra.mxu0 0.0
    %97 = vmatpush.xpose.msra.mxu0 0.0
    %98 = vmatpush.xpose.msra.mxu0 0.0
    %99 = vmatpush.xpose.msra.mxu0 0.0
    %100 = vmatpush.xpose.msra.mxu0 0.0
    %101 = vmatpush.xpose.msra.mxu0 %v85
    %102 = vmatpush.xpose.msra.mxu0 %v82
    %103 = vmatmul.f32.gmra.mxu0 %v76
    %v104 = vpop.f32.mrf.mxu0
    %v105 = vadd.f32 0.0, %v104
    %106 = vmatmul.f32.gmra.mxu0 %v79
    %v107 = vpop.f32.mrf.mxu0
    %v108 = vadd.f32 0.0, %v107
    %109 = vdwg.mxu0
    %v110 = vld [vmem:[#allocation2] sm:$0xff]
    %v111 = vld [vmem:[#allocation2 + $0x8] sm:$0xff]
    %v112 = vmul.f32 %v105, 1.442695
    %v113 = vpow.pop %v112
    %v114 = vmul.f32 %v108, 1.442695
    %v115 = vpow.pop %v114
    %vm116 = vcmask 130048
    %v117 = vsel %vm116, %v113, 0.0
    %118 = vadd.xlane.f32.xlu0 %v117
    %v119 = vpop.xlane.xlu0 %118
    %v120 = vsel %vm116, %v115, 0.0
    %121 = vadd.xlane.f32.xlu0 %v120
    %v122 = vpop.xlane.xlu0 %121
    %v123 = vadd.f32 %v110, %v119
    %v124 = vadd.f32 %v111, %v122
    %vm125 = vcmask 7168
    %126 = vst.msk [vmem:[#allocation2] sm:$0xff] %vm125, %v123
    %127 = vst.msk [vmem:[#allocation2 + $0x8] sm:$0xff] %vm125, %v124
    // Predicated region
    $region30: #{tpu_custom_call.1} parent=1 // pred_check
      %p128 = pneg %p61
    $region31: #{tpu_custom_call.1} parent=1 // pred_check_branch
      %130 = sbr.rel (%p128) target = $region33
    $region32: #{tpu_custom_call.1} parent=1 // pred_region
      %v131 = vld [vmem:[#allocation7] sm:$0xff]
      %v132 = vld [vmem:[#allocation7 + $0x8] sm:$0xff]
      %v133 = vmul.f32 %v68, %v68
      %v134 = vmul.f32 %v69, %v69
      %v135 = vsel %vm74, %v133, 0.0
      %136 = vadd.xlane.f32.xlu0 %v135
      %v137 = vpop.xlane.xlu0 %136
      %v138 = vsel %vm74, %v134, 0.0
      %139 = vadd.xlane.f32.xlu0 %v138
      %v140 = vpop.xlane.xlu0 %139
      %v141 = vmul.f32 %v137, 2.0
      %v142 = vmul.f32 %v140, 2.0
      %v143 = vmul.f32 %v141, 1.442695
      %v144 = vpow.pop %v143
      %v145 = vmul.f32 %v142, 1.442695
      %v146 = vpow.pop %v145
      %v147 = vld [vmem:[#allocation2] sm:$0xff]
      %v148 = vld [vmem:[#allocation2 + $0x8] sm:$0xff]
      %v149 = vsub.f32 %v147, %v144
      %v150 = vsub.f32 %v148, %v146
      %v151 = vmul.f32 %v68, %v131
      %v152 = vmul.f32 %v69, %v132
      %v153 = vsel %vm74, %v151, 0.0
      %154 = vadd.xlane.f32.xlu0 %v153
      %v155 = vpop.xlane.xlu0 %154
      %v156 = vsel %vm74, %v152, 0.0
      %157 = vadd.xlane.f32.xlu0 %v156
      %v158 = vpop.xlane.xlu0 %157
      %v159 = vmul.f32 %v155, 2.0
      %v160 = vmul.f32 %v158, 2.0
      %v161 = vlog2.pop %v149
      %v162 = vmul.f32 %v161, 0.6931472
      %v163 = vlog2.pop %v150
      %v164 = vmul.f32 %v163, 0.6931472
      %v165 = vsub.f32 %v162, %v159
      %v166 = vsub.f32 %v164, %v160
      %167 = vst.msk [vmem:[%s3] sm:$0xff] %vm125, %v165
      %168 = vst.msk [vmem:[%s3 + $0x8] sm:$0xff] %vm125, %v166
    $region33: #{tpu_custom_call.1} parent=1 // pred_fallthru
      _
    // Predicated region
    $region34: #{tpu_custom_call.1} parent=1 // pred_check
      _
    $region35: #{tpu_custom_call.1} parent=1 // pred_check_branch
      %170 = sbr.rel (0) target = $region37
    $region36: #{tpu_custom_call.1} parent=1 // pred_region
      _
    $region37: #{tpu_custom_call.1} parent=1 // pred_fallthru
      _
    // Predicated region
    $region38: #{tpu_custom_call.1} parent=1 // pred_check
      _
    $region39: #{tpu_custom_call.1} parent=1 // pred_check_branch
      %172 = sbr.rel (0) target = $region41
    $region40: #{tpu_custom_call.1} parent=1 // pred_region
      _
    $region41: #{tpu_custom_call.1} parent=1 // pred_fallthru
      _
    %173 = vsyncpa [#allocation4], 1
    %174 = vsyncpa [#allocation6], 1

</llo_original>
